<compile_context>
chip_gen: v6e
topology: v6e:2x2x1
jax: 0.10.0
libtpu: 0.0.40
codegen_flags: <defaults>
</compile_context>

<pallas_src>
import functools

import jax
import jax.numpy as jnp
from jax.experimental import pallas as pl
from jax.experimental.pallas import tpu as pltpu


def _embedding_kernel(seed_ref, x_ref, pe_ref, o_ref, *, drop_prob, training):
    # x_ref:  (TB, TS)      -- token values for this tile
    # pe_ref: (TS, D)       -- positional-encoding rows for this S-tile
    # o_ref:  (TB, TS, D)
    #
    # NOTE: x has TS on lanes, but the 3D broadcast wants TS on sublanes, so
    # Mosaic inserts an XLU relayout here.  It is filler under the output DMA
    # on v5e/v6e; re-check the bundle on v7x before restructuring.
    tok = x_ref[...][:, :, None]           # (TB, TS, 1) -> broadcast over D (lanes)
    pos = pe_ref[...][None, :, :]          # (1, TS, D)  -> broadcast over TB
    val = (tok + pos).astype(jnp.float32)  # (TB, TS, D)

    if training and drop_prob >= 1.0:
        # p == 1: everything dropped (avoid inf scale).
        val = jnp.zeros_like(val)
    elif training and drop_prob > 0.0:
        # Per-tile independent seed so the mask is not repeated across tiles.
        si = pl.program_id(0)
        bi = pl.program_id(1)
        tile_id = si * pl.num_programs(1) + bi
        pltpu.prng_seed(seed_ref[0] + tile_id)

        # Integer-domain inverted dropout: drop iff bits < p * 2^32.
        bits = pltpu.bitcast(pltpu.prng_random_bits(val.shape), jnp.uint32)
        threshold = min(int(round(drop_prob * (1 << 32))), (1 << 32) - 1)
        keep = bits >= jnp.uint32(threshold)
        scale = jnp.float32(1.0 / (1.0 - drop_prob))
        # Fold the scale into the select (select on constants + one mul).
        val = val * jnp.where(keep, scale, jnp.float32(0.0))

    o_ref[...] = val.astype(o_ref.dtype)


def make_positional_encoding(max_len, d_model, dtype=jnp.float32):
    # Standard sinusoidal PE: even dims sin, odd dims cos.
    pos = jnp.arange(max_len, dtype=jnp.float32)[:, None]             # (L, 1)
    two_i = jnp.arange(0, d_model, 2, dtype=jnp.float32)[None, :]     # (1, D/2)
    div = jnp.power(10000.0, two_i / d_model)
    angles = pos / div                                                # (L, D/2)
    pe = jnp.zeros((max_len, d_model), dtype=jnp.float32)
    pe = pe.at[:, 0::2].set(jnp.sin(angles))
    pe = pe.at[:, 1::2].set(jnp.cos(angles))
    return pe.astype(dtype)


# ----------------------------------------------------------------------------
# VMEM-budget-aware tiling
# ----------------------------------------------------------------------------

_TS_CANDIDATES = (1024, 512, 256, 128)   # lane-friendly S-tile sizes


def _vmem_budget_and_limit():
    """Per-generation tile budget + explicit scoped-VMEM limit (bytes)."""
    kind = ""
    try:
        kind = jax.devices()[0].device_kind.lower()
    except Exception:
        pass
    if "v5 lite" in kind or "v5e" in kind:
        budget = 12 << 20            # v5e scoped default is 16 MiB
    else:
        budget = 26 << 20            # v6e / v7x: raise scoped limit to ~32 MiB
    return budget, budget + (6 << 20)


def _tile_vmem_bytes(tb, ts, d, out_bytes):
    # Pallas double-buffers every pipelined operand: output, PE slab, x tile.
    return 2 * (tb * ts * d * out_bytes) + 2 * (ts * d * 4) + 2 * (tb * ts * 4)


def _pick_tiles(B, S, D, out_bytes, budget):
    """Pick (TS, TB) jointly so the double-buffered footprint fits the budget."""
    ts_cands = [t for t in _TS_CANDIDATES if S % t == 0] or [S]
    tb_min = 8 if B % 8 == 0 else min(B, 8)

    # Largest S-tile whose minimal-TB footprint fits.
    ts = ts_cands[-1]
    for cand in ts_cands:
        if _tile_vmem_bytes(tb_min, cand, D, out_bytes) <= budget:
            ts = cand
            break

    # Batch tile: multiple of 8 (or full B); grow while it still fits.
    if B % 8 == 0:
        tb = 8
        while (B % (tb * 2) == 0
               and _tile_vmem_bytes(tb * 2, ts, D, out_bytes) <= budget):
            tb *= 2
    else:
        tb = B   # full-dim block is exempt; the wrapper pads B if it won't fit

    # Keep >= 2 grid steps when legal so both v7x TensorCores get work;
    # prefer splitting B so the PE slab's residency across B still holds.
    if (S // ts) * (B // tb) < 2:
        if tb >= 16 and (tb // 2) % 8 == 0:
            tb //= 2
        elif ts >= 256 and (ts // 2) % 128 == 0:
            ts //= 2
    return ts, tb


# ----------------------------------------------------------------------------
# Wrapper
# ----------------------------------------------------------------------------

def transformer_embedding(x, pos_enc, *, drop_prob=0.1, training=False, seed=0,
                          out_dtype=None):
    """x: (B, S) float; pos_enc: (max_len, D); returns (B, S, D)."""
    B, S = x.shape
    max_len, D = pos_enc.shape
    assert S <= max_len, "sequence length exceeds positional-encoding table"
    assert 0.0 <= drop_prob <= 1.0, "drop_prob must be in [0, 1]"
    out_dtype = x.dtype if out_dtype is None else out_dtype
    out_bytes = jnp.dtype(out_dtype).itemsize

    budget, vmem_limit = _vmem_budget_and_limit()

    # Tile selection (+ batch padding when B % 8 != 0 and a full-B block
    # would not fit the budget).
    Bp, pad_b = B, 0
    TS, TB = _pick_tiles(B, S, D, out_bytes, budget)
    if B % 8 != 0 and _tile_vmem_bytes(TB, TS, D, out_bytes) > budget:
        Bp = ((B + 7) // 8) * 8
        pad_b = Bp - B
        TS, TB = _pick_tiles(Bp, S, D, out_bytes, budget)
    x_in = x if pad_b == 0 else jnp.pad(x, ((0, pad_b), (0, 0)))

    ns = S // TS
    nb = Bp // TB

    # Make sure the compiler's scoped-VMEM cap covers the chosen tiles.
    vmem_limit = int(max(vmem_limit,
                         _tile_vmem_bytes(TB, TS, D, out_bytes) + (2 << 20)))

    # Pass the full PE table and let the BlockSpec pick rows (no wrapper copy),
    # unless the (TS, D) block would violate the sublane rule for that array.
    if TS % 8 == 0 or TS == max_len:
        pe_in = pos_enc
    else:
        pe_in = pos_enc[:S]   # rare fallback: full-dim block exemption

    seed_arr = jnp.asarray([seed], dtype=jnp.int32)
    kernel = functools.partial(
        _embedding_kernel, drop_prob=float(drop_prob), training=bool(training)
    )

    # Grid order: S-tiles outer, B-tiles inner -> the PE block (depends only on
    # the S-tile index) stays resident in VMEM across the inner B iterations.
    out = pl.pallas_call(
        kernel,
        out_shape=jax.ShapeDtypeStruct((Bp, S, D), out_dtype),
        grid_spec=pltpu.PrefetchScalarGridSpec(
            num_scalar_prefetch=0,
            grid=(ns, nb),
            in_specs=[
                pl.BlockSpec(memory_space=pltpu.MemorySpace.SMEM),   # seed scalar
                pl.BlockSpec((TB, TS), lambda si, bi: (bi, si)),     # x
                pl.BlockSpec((TS, D), lambda si, bi: (si, 0)),       # pos enc
            ],
            out_specs=pl.BlockSpec((TB, TS, D), lambda si, bi: (bi, si, 0)),
        ),
        compiler_params=pltpu.CompilerParams(
            dimension_semantics=("parallel", "parallel"),
            vmem_limit_bytes=vmem_limit,
        ),
    )(seed_arr, x_in, pe_in)

    return out if pad_b == 0 else out[:B]


def transformer_embedding_ref(x, pos_enc):
    """Pure-JAX reference (eval mode: dropout is identity)."""
    B, S = x.shape
    D = pos_enc.shape[1]
    tok = jnp.broadcast_to(x[:, :, None], (B, S, D))
    return tok + pos_enc[None, :S, :]


if __name__ == "__main__":
    key = jax.random.PRNGKey(0)
    k1, k2 = jax.random.split(key)

    # --- Small shapes consistent with the module's forward (eval mode). ---
    B, S, d_model, max_len, drop_prob = 2, 8, 32, 64, 0.1
    x = jax.random.normal(k1, (B, S), dtype=jnp.float32)
    pos_enc = make_positional_encoding(max_len, d_model)

    out = jax.block_until_ready(
        transformer_embedding(x, pos_enc, drop_prob=drop_prob, training=False))
    ref = transformer_embedding_ref(x, pos_enc)
    assert out.shape == (B, S, d_model)
    assert jnp.allclose(out, ref, atol=1e-5, rtol=1e-5)

    # --- bf16 writeback option (halves HBM write bytes on this write-bound op). ---
    out_bf = jax.block_until_ready(
        transformer_embedding(x, pos_enc, drop_prob=drop_prob, training=False,
                              out_dtype=jnp.bfloat16))
    assert out_bf.dtype == jnp.bfloat16
    assert jnp.allclose(out_bf.astype(jnp.float32), ref, atol=3e-2, rtol=3e-2)

    # --- Larger case exercising a multi-step grid (PE slab resident across B). ---
    B2, S2, D2, L2 = 8, 384, 128, 512
    x2 = jax.random.normal(k2, (B2, S2), dtype=jnp.float32)
    pe2 = make_positional_encoding(L2, D2)
    out2 = jax.block_until_ready(
        transformer_embedding(x2, pe2, drop_prob=drop_prob, training=False))
    ref2 = transformer_embedding_ref(x2, pe2)
    assert out2.shape == (B2, S2, D2)
    assert jnp.allclose(out2, ref2, atol=1e-5, rtol=1e-5)

    # --- Training-mode dropout uses the TPU hardware PRNG, which only lowers
    #     on a real TPU backend (not CPU / plain interpret mode). ---
    # TODO(synk): dropout mask comes from the TPU hardware PRNG; semantics
    # (inverted dropout, keep-prob 1-p) match nn.Dropout but the mask is not
    # bit-identical to torch's RNG stream.
    if jax.default_backend() == "tpu":
        out_tr = jax.block_until_ready(
            transformer_embedding(x2, pe2, drop_prob=drop_prob, training=True,
                                  seed=123))
        assert out_tr.shape == (B2, S2, D2)
        assert bool(jnp.all(jnp.isfinite(out_tr)))

    print("KERNEL_OK")
</pallas_src>

<mosaic_0001>
module attributes {stable_mosaic.version = 11 : i64} {
  func.func @_embedding_kernel(%arg0: i32, %arg1: i32, %arg2: memref<1xi32, #tpu.memory_space<smem>>, %arg3: memref<2x8xf32, #tpu.memory_space<vmem>>, %arg4: memref<8x32xf32, #tpu.memory_space<vmem>>, %arg5: memref<2x8x32xf32, #tpu.memory_space<vmem>>) attributes {dimension_semantics = [#tpu.dimension_semantics<parallel>, #tpu.dimension_semantics<parallel>], iteration_bounds = array<i64: 1, 1>, scalar_prefetch = 0 : i64, scratch_operands = 0 : i64, tpu.core_type = #tpu.core_type<tc>, window_params = [{transform_indices = @transform_0, window_bounds = array<i64: 1>}, {transform_indices = @transform_1, window_bounds = array<i64: 2, 8>}, {transform_indices = @transform_2, window_bounds = array<i64: 8, 32>}, {transform_indices = @transform_3, window_bounds = array<i64: 2, 8, 32>}]} {
    %c0 = arith.constant 0 : index
    %c0_0 = arith.constant 0 : index
    %0 = vector.load %arg3[%c0, %c0_0] : memref<2x8xf32, #tpu.memory_space<vmem>>, vector<2x8xf32>
    %1 = vector.shape_cast %0 : vector<2x8xf32> to vector<2x8x1xf32>
    %c0_1 = arith.constant 0 : index
    %c0_2 = arith.constant 0 : index
    %2 = vector.load %arg4[%c0_1, %c0_2] : memref<8x32xf32, #tpu.memory_space<vmem>>, vector<8x32xf32>
    %3 = vector.shape_cast %2 : vector<8x32xf32> to vector<1x8x32xf32>
    %4 = vector.broadcast %1 : vector<2x8x1xf32> to vector<2x8x32xf32>
    %5 = vector.broadcast %3 : vector<1x8x32xf32> to vector<2x8x32xf32>
    %6 = arith.addf %4, %5 : vector<2x8x32xf32>
    %c0_3 = arith.constant 0 : index
    %c0_4 = arith.constant 0 : index
    %c0_5 = arith.constant 0 : index
    %7 = vector.load %arg5[%c0_3, %c0_4, %c0_5] : memref<2x8x32xf32, #tpu.memory_space<vmem>>, vector<2x8x32xf32>
    tpu.vector_store %arg5[%c0_3, %c0_4, %c0_5], %6 {strides = array<i32>} : memref<2x8x32xf32, #tpu.memory_space<vmem>>, vector<2x8x32xf32>,
    return
  }
  func.func @transform_0(%arg0: i32, %arg1: i32) -> i32 {
    %c0_i32 = arith.constant 0 : i32
    %c0_i32_0 = arith.constant 0 : i32
    return %c0_i32 : i32
  }
  func.func @transform_1(%arg0: i32, %arg1: i32) -> (i32, i32) {
    %c0_i32 = arith.constant 0 : i32
    return %arg1, %arg0 : i32, i32
  }
  func.func @transform_2(%arg0: i32, %arg1: i32) -> (i32, i32) {
    %c0_i32 = arith.constant 0 : i32
    %c0_i32_0 = arith.constant 0 : i32
    return %arg0, %c0_i32 : i32, i32
  }
  func.func @transform_3(%arg0: i32, %arg1: i32) -> (i32, i32, i32) {
    %c0_i32 = arith.constant 0 : i32
    %c0_i32_0 = arith.constant 0 : i32
    return %arg1, %arg0, %c0_i32 : i32, i32, i32
  }
}

</mosaic_0001>

<llo_original>
// kernel: tpu_custom_call.1
$region0: #{tpu_custom_call.1}
  #allocation0 [shape = 'u32[]', space=smem, size = 0x4, offset = 0x4, fixed_abs, tag = 'smem constant byte address 0x4 - core index']
  #allocation1 [shape = 'u32[144,128]{1,0:T(1,128)}', space=vmem, size = 0x12000, scoped, tag = 'internal scratch']
  #allocation2 [shape = 's32[1]{0:T(128)S(6)}', space=smem, size = 0x200, scoped, tag = 'scoped memory for tpu_custom_call.1']
  %s0 = inlined_call_operand.<no memory space> [shape: s32[1], index: 0, kind: input, shape index: {}]
  %s1 = inlined_call_operand.vmem [shape: f32[2,8], index: 1, kind: input, shape index: {}]
  %s2 = inlined_call_operand.vmem [shape: f32[64,32], index: 2, kind: input, shape index: {}]
  %s3 = inlined_call_operand.hbm [shape: f32[2,8,32], index: 3, kind: output, shape index: {}]
  %s4 = sld [smem:[#allocation0]]
  $region22: #{tpu_custom_call.1} parent=0
    _
  %s6 = ssub.s32 1, %s4
  %s7 = scalar_select 0, %s6, %s4
  %8 = sst [smem:[#allocation2]] %s0
  $region1: #{tpu_custom_call.1} parent=0
    #allocation3 [shape = 'u8[8192]{0}', space=vmem, size = 0x2000, scoped, tag = 'output window, operand 0, single buffered']
    #allocation4 [shape = 's32[1]{0}', space=sflag, size = 0x4, scoped, tag = 'scoped memory for tpu_custom_call.1']
    %9 = vsyncpa [#allocation4], 0
    // Predicated region
    $region2: #{tpu_custom_call.1} parent=1 // pred_check
      _
    $region3: #{tpu_custom_call.1} parent=1 // pred_check_branch
      %11 = sbr.rel (0) target = $region5
    $region4: #{tpu_custom_call.1} parent=1 // pred_region
      _
    $region5: #{tpu_custom_call.1} parent=1 // pred_fallthru
      _
    // Predicated region
    $region6: #{tpu_custom_call.1} parent=1 // pred_check
      _
    $region7: #{tpu_custom_call.1} parent=1 // pred_check_branch
      %13 = sbr.rel (0) target = $region9
    $region8: #{tpu_custom_call.1} parent=1 // pred_region
      _
    $region9: #{tpu_custom_call.1} parent=1 // pred_fallthru
      _
    // Predicated region
    $region10: #{tpu_custom_call.1} parent=1 // pred_check
      _
    $region11: #{tpu_custom_call.1} parent=1 // pred_check_branch
      %15 = sbr.rel (0) target = $region13
    $region12: #{tpu_custom_call.1} parent=1 // pred_region
      _
    $region13: #{tpu_custom_call.1} parent=1 // pred_fallthru
      _
    %v16 = vld [vmem:[%s1] sm:$0x3]
    %v17 = vlaneseq
    %v18 = vshrl.u32 %v17, 7
    %v19 = vsub.s32 0, %v18
    %v20 = vrot.slane %v16, %v19
    %22 = vbcast.lane.b32.xlu0 %v20, 256
    %v23 = vpop.permute.xlu0 %22
    %v24 = vlaneseq
    %v25 = vshrl.u32 %v24, 7
    %v26 = vsub.s32 1, %v25
    %v27 = vrot.slane %v16, %v26
    %29 = vbcast.lane.b32.xlu0 %v27, 256
    %v30 = vpop.permute.xlu0 %29
    %v31 = vld [vmem:[%s2] sm:$0xff]
    %v32 = vadd.f32 %v23, %v31
    %v33 = vadd.f32 %v30, %v31
    %vm34 = vcmask 261120
    %35 = vst.msk [vmem:[#allocation3] sm:$0xff] %vm34, %v32
    %36 = vst.msk [vmem:[#allocation3 + $0x8] sm:$0xff] %vm34, %v33
    // Predicated region
    $region14: #{tpu_custom_call.1} parent=1 // pred_check
      _
    $region15: #{tpu_custom_call.1} parent=1 // pred_check_branch
      %38 = sbr.rel (0) target = $region17
    $region16: #{tpu_custom_call.1} parent=1 // pred_region
      %s40 = ssub.s32 256, 256
      %41 = vsyncadd [#allocation4], %s40
      %s42 = sshll.u32 [#allocation3], 4
      %s43 = int_to_ptr.vmem [resolvable:$true] %s42
      %48 = dma.vmem_to_hbm [thread:$0]  %s43, 256, %s3, [#allocation4], 128, 128, 8
    $region17: #{tpu_custom_call.1} parent=1 // pred_fallthru
      _
    // Predicated region
    $region18: #{tpu_custom_call.1} parent=1 // pred_check
      _
    $region19: #{tpu_custom_call.1} parent=1 // pred_check_branch
      %50 = sbr.rel (0) target = $region21
    $region20: #{tpu_custom_call.1} parent=1 // pred_region
      %51 = dma.done [#allocation4], 256
    $region21: #{tpu_custom_call.1} parent=1 // pred_fallthru
      _
    %52 = vsyncpa [#allocation4], 1

</llo_original>
